<compile_context>
chip_gen: v7x
topology: tpu7x:2x2x1
jax: 0.10.0
libtpu: 0.0.40
codegen_flags: <defaults>
</compile_context>

<pallas_src>
import jax
import jax.numpy as jnp
from jax.experimental import pallas as pl
from jax.experimental.pallas import tpu as pltpu


def _round_up(x, m):
    return ((x + m - 1) // m) * m


def _default_row_tile():
    # 128-row tiles for v5e's 4x128x128 MXU, 256 for v6e/v7x's 2x256x256.
    try:
        kind = jax.devices()[0].device_kind.lower()
    except Exception:
        return 256
    return 128 if "v5" in kind else 256


def _pick_hidden_tile(hidden):
    # Prefer a lane-aligned tile that divides hidden; otherwise take the
    # full hidden extent (fine for small models).
    for th in (2048, 1024, 512, 256, 128):
        if hidden % th == 0:
            return th
    return hidden


def _ffn_kernel(x_ref, w13_ref, w2_ref, o_ref, acc_ref):
    # x_ref:   (tm, dim)     row tile of the input (resident across k)
    # w13_ref: (dim, 2*th)   [w1-cols | w3-cols] for hidden tile k
    # w2_ref:  (th, dim)     down-projection rows for hidden tile k
    # o_ref:   (tm, dim)
    # acc_ref: (tm, dim) f32 accumulator (VMEM scratch)
    k = pl.program_id(1)

    @pl.when(k == 0)
    def _():
        acc_ref[...] = jnp.zeros_like(acc_ref)

    th = w2_ref.shape[0]

    # Fused gate+up projection, f32 accumulation on the MXU.
    h = jnp.dot(x_ref[...], w13_ref[...], preferred_element_type=jnp.float32)
    h1 = h[:, :th]
    h3 = h[:, th:]
    gated = (h1 * jax.nn.sigmoid(h1)) * h3          # SiLU(h1) * h3, f32

    acc_ref[...] += jnp.dot(gated.astype(w2_ref.dtype), w2_ref[...],
                            preferred_element_type=jnp.float32)

    @pl.when(k == pl.num_programs(1) - 1)
    def _():
        o_ref[...] = acc_ref[...].astype(o_ref.dtype)


def feed_forward_pallas(x, w1_t, w3_t, w2_t, *, tm=None, th=None):
    """x: (..., dim); w1_t/w3_t: (dim, hidden); w2_t: (hidden, dim)."""
    orig_shape = x.shape
    dim = orig_shape[-1]
    hidden = w1_t.shape[1]
    assert w1_t.shape == (dim, hidden)
    assert w3_t.shape == (dim, hidden)
    assert w2_t.shape == (hidden, dim)

    M = 1
    for s in orig_shape[:-1]:
        M *= s
    x2d = x.reshape(M, dim)

    # Row tile: large by default, clamped for small inputs, sublane aligned.
    if tm is None:
        tm = _default_row_tile()
    tm = min(tm, _round_up(M, 8))
    M_pad = _round_up(M, tm)
    if M_pad != M:
        x2d = jnp.pad(x2d, ((0, M_pad - M), (0, 0)))   # zero rows -> zero out

    # Hidden (reduction) tile.
    if th is None:
        th = _pick_hidden_tile(hidden)
    assert hidden % th == 0
    n_h = hidden // th

    # Fuse w1/w3: column block k of w13 (width 2*th) is [w1 tile k | w3 tile k].
    w13 = jnp.concatenate(
        [w1_t.reshape(dim, n_h, th), w3_t.reshape(dim, n_h, th)], axis=2
    ).reshape(dim, 2 * hidden)

    # Rough double-buffered VMEM need; raise the scoped limit with headroom
    # but stay within v7x's 64 MiB physical VMEM per TensorCore.
    x_item = x2d.dtype.itemsize
    vmem_need = 2 * (tm * dim * x_item
                     + dim * 2 * th * w13.dtype.itemsize
                     + th * dim * w2_t.dtype.itemsize
                     + tm * dim * x_item)
    vmem_need += tm * dim * 4  # accumulator
    vmem_limit = int(min(max(2 * vmem_need, 32 * 1024 * 1024),
                         64 * 1024 * 1024))

    out2d = pl.pallas_call(
        _ffn_kernel,
        out_shape=jax.ShapeDtypeStruct((M_pad, dim), x.dtype),
        grid_spec=pltpu.PrefetchScalarGridSpec(
            num_scalar_prefetch=0,
            grid=(M_pad // tm, n_h),
            in_specs=[
                pl.BlockSpec((tm, dim), lambda i, k: (i, 0)),      # x rows
                pl.BlockSpec((dim, 2 * th), lambda i, k: (0, k)),  # [w1|w3] tile
                pl.BlockSpec((th, dim), lambda i, k: (k, 0)),      # w2 tile
            ],
            out_specs=pl.BlockSpec((tm, dim), lambda i, k: (i, 0)),
            scratch_shapes=[pltpu.VMEM((tm, dim), jnp.float32)],
        ),
        compiler_params=pltpu.CompilerParams(
            dimension_semantics=("parallel", "arbitrary"),
            vmem_limit_bytes=vmem_limit,
        ),
    )(x2d, w13, w2_t)

    if M_pad != M:
        out2d = out2d[:M]
    return out2d.reshape(orig_shape)


def _llama_hidden_dim(dim, hidden_dim, multiple_of):
    if hidden_dim is None:
        hidden_dim = 4 * dim
        hidden_dim = int(2 * hidden_dim / 3)
        hidden_dim = multiple_of * ((hidden_dim + multiple_of - 1) // multiple_of)
    return hidden_dim


def _ref_ffn(x, w1_t, w3_t, w2_t):
    h1 = x @ w1_t
    return (h1 * jax.nn.sigmoid(h1) * (x @ w3_t)) @ w2_t


if __name__ == "__main__":
    # Small shapes consistent with the module: dim=32, multiple_of=32
    # -> hidden_dim = ceil((2*4*32/3)/32)*32 = 96
    dim = 32
    multiple_of = 32
    hidden_dim = _llama_hidden_dim(dim, None, multiple_of)  # = 96
    batch, seq = 2, 8

    key = jax.random.PRNGKey(0)
    kx, k1, k2, k3 = jax.random.split(key, 4)

    x = jax.random.normal(kx, (batch, seq, dim), dtype=jnp.float32)

    # PyTorch stores Linear weight as (out_features, in_features); we build
    # directly in transposed (in, out) layout for the kernel.
    scale_in = 1.0 / jnp.sqrt(dim)
    scale_hid = 1.0 / jnp.sqrt(hidden_dim)
    w1_t = jax.random.uniform(k1, (dim, hidden_dim), jnp.float32,
                              -scale_in, scale_in)
    w3_t = jax.random.uniform(k3, (dim, hidden_dim), jnp.float32,
                              -scale_in, scale_in)
    w2_t = jax.random.uniform(k2, (hidden_dim, dim), jnp.float32,
                              -scale_hid, scale_hid)

    # Test 1: nominal shape.
    out = feed_forward_pallas(x, w1_t, w3_t, w2_t)
    out = jax.block_until_ready(out)
    ref = _ref_ffn(x, w1_t, w3_t, w2_t)
    assert out.shape == (batch, seq, dim)
    assert jnp.allclose(out, ref, atol=1e-5, rtol=1e-5)

    # Test 2: row count not divisible by the tile (exercises cdiv + padding).
    x_odd = x[:, :5, :]                       # M = 10 rows
    out_odd = jax.block_until_ready(feed_forward_pallas(x_odd, w1_t, w3_t, w2_t))
    ref_odd = _ref_ffn(x_odd, w1_t, w3_t, w2_t)
    assert jnp.allclose(out_odd, ref_odd, atol=1e-5, rtol=1e-5)

    print("KERNEL_OK")
</pallas_src>

<mosaic_0001>
module attributes {stable_mosaic.version = 11 : i64} {
  func.func @_ffn_kernel(%arg0: i32, %arg1: i32, %arg2: memref<16x32xf32, #tpu.memory_space<vmem>>, %arg3: memref<32x192xf32, #tpu.memory_space<vmem>>, %arg4: memref<96x32xf32, #tpu.memory_space<vmem>>, %arg5: memref<16x32xf32, #tpu.memory_space<vmem>>, %arg6: memref<16x32xf32, #tpu.memory_space<vmem>>) attributes {dimension_semantics = [#tpu.dimension_semantics<parallel>, #tpu.dimension_semantics<arbitrary>], iteration_bounds = array<i64: 1, 1>, scalar_prefetch = 0 : i64, scratch_operands = 1 : i64, tpu.core_type = #tpu.core_type<tc>, window_params = [{transform_indices = @transform_0, window_bounds = array<i64: 16, 32>}, {transform_indices = @transform_1, window_bounds = array<i64: 32, 192>}, {transform_indices = @transform_2, window_bounds = array<i64: 96, 32>}, {transform_indices = @transform_3, window_bounds = array<i64: 16, 32>}]} {
    %c0_i32 = arith.constant 0 : i32
    %0 = arith.cmpi eq, %arg1, %c0_i32 : i32
    %1 = arith.extui %0 : i1 to i32
    %c0_i32_0 = arith.constant 0 : i32
    %2 = arith.cmpi ne, %1, %c0_i32_0 : i32
    scf.if %2 {
      %cst_14 = arith.constant 0.000000e+00 : f32
      %23 = vector.broadcast %cst_14 : f32 to vector<16x32xf32>
      %c0_15 = arith.constant 0 : index
      %c0_16 = arith.constant 0 : index
      %24 = vector.load %arg6[%c0_15, %c0_16] : memref<16x32xf32, #tpu.memory_space<vmem>>, vector<16x32xf32>
      tpu.vector_store %arg6[%c0_15, %c0_16], %23 {strides = array<i32>} : memref<16x32xf32, #tpu.memory_space<vmem>>, vector<16x32xf32>,
    } else {
    }
    %c0 = arith.constant 0 : index
    %c0_1 = arith.constant 0 : index
    %3 = vector.load %arg2[%c0, %c0_1] : memref<16x32xf32, #tpu.memory_space<vmem>>, vector<16x32xf32>
    %c0_2 = arith.constant 0 : index
    %c0_3 = arith.constant 0 : index
    %4 = vector.load %arg3[%c0_2, %c0_3] : memref<32x192xf32, #tpu.memory_space<vmem>>, vector<32x192xf32>
    %cst = arith.constant dense<0.000000e+00> : vector<16x192xf32>
    %5 = tpu.matmul %3, %4, %cst {dimension_numbers = #tpu.dot_dimension_numbers<[1], [0], [0], [1], [0, 0, 1, 1], [], []>} : vector<16x32xf32>, vector<32x192xf32>, vector<16x192xf32> -> vector<16x192xf32>
    %6 = vector.extract_strided_slice %5 {offsets = [0, 0], sizes = [16, 96], strides = [1, 1]} : vector<16x192xf32> to vector<16x96xf32>
    %7 = vector.extract_strided_slice %5 {offsets = [0, 96], sizes = [16, 96], strides = [1, 1]} : vector<16x192xf32> to vector<16x96xf32>
    %8 = arith.negf %6 : vector<16x96xf32>
    %9 = math.exp %8 : vector<16x96xf32>
    %cst_4 = arith.constant 1.000000e+00 : f32
    %10 = vector.broadcast %cst_4 : f32 to vector<16x96xf32>
    %11 = arith.addf %10, %9 : vector<16x96xf32>
    %12 = arith.divf %10, %11 : vector<16x96xf32>
    %13 = arith.mulf %6, %12 : vector<16x96xf32>
    %14 = arith.mulf %13, %7 : vector<16x96xf32>
    %c0_5 = arith.constant 0 : index
    %c0_6 = arith.constant 0 : index
    %15 = vector.load %arg6[%c0_5, %c0_6] : memref<16x32xf32, #tpu.memory_space<vmem>>, vector<16x32xf32>
    %c0_7 = arith.constant 0 : index
    %c0_8 = arith.constant 0 : index
    %16 = vector.load %arg4[%c0_7, %c0_8] : memref<96x32xf32, #tpu.memory_space<vmem>>, vector<96x32xf32>
    %cst_9 = arith.constant dense<0.000000e+00> : vector<16x32xf32>
    %17 = tpu.matmul %14, %16, %cst_9 {dimension_numbers = #tpu.dot_dimension_numbers<[1], [0], [0], [1], [0, 0, 1, 1], [], []>} : vector<16x96xf32>, vector<96x32xf32>, vector<16x32xf32> -> vector<16x32xf32>
    %18 = arith.addf %15, %17 : vector<16x32xf32>
    %c0_10 = arith.constant 0 : index
    %c0_11 = arith.constant 0 : index
    %19 = vector.load %arg6[%c0_10, %c0_11] : memref<16x32xf32, #tpu.memory_space<vmem>>, vector<16x32xf32>
    tpu.vector_store %arg6[%c0_10, %c0_11], %18 {strides = array<i32>} : memref<16x32xf32, #tpu.memory_space<vmem>>, vector<16x32xf32>,
    %c0_i32_12 = arith.constant 0 : i32
    %20 = arith.cmpi eq, %arg1, %c0_i32_12 : i32
    %21 = arith.extui %20 : i1 to i32
    %c0_i32_13 = arith.constant 0 : i32
    %22 = arith.cmpi ne, %21, %c0_i32_13 : i32
    scf.if %22 {
      %c0_14 = arith.constant 0 : index
      %c0_15 = arith.constant 0 : index
      %23 = vector.load %arg6[%c0_14, %c0_15] : memref<16x32xf32, #tpu.memory_space<vmem>>, vector<16x32xf32>
      %c0_16 = arith.constant 0 : index
      %c0_17 = arith.constant 0 : index
      %24 = vector.load %arg5[%c0_16, %c0_17] : memref<16x32xf32, #tpu.memory_space<vmem>>, vector<16x32xf32>
      tpu.vector_store %arg5[%c0_16, %c0_17], %23 {strides = array<i32>} : memref<16x32xf32, #tpu.memory_space<vmem>>, vector<16x32xf32>,
    } else {
    }
    return
  }
  func.func @transform_0(%arg0: i32, %arg1: i32) -> (i32, i32) {
    %c0_i32 = arith.constant 0 : i32
    %c0_i32_0 = arith.constant 0 : i32
    return %arg0, %c0_i32 : i32, i32
  }
  func.func @transform_1(%arg0: i32, %arg1: i32) -> (i32, i32) {
    %c0_i32 = arith.constant 0 : i32
    %c0_i32_0 = arith.constant 0 : i32
    return %c0_i32, %arg1 : i32, i32
  }
  func.func @transform_2(%arg0: i32, %arg1: i32) -> (i32, i32) {
    %c0_i32 = arith.constant 0 : i32
    %c0_i32_0 = arith.constant 0 : i32
    return %arg1, %c0_i32 : i32, i32
  }
  func.func @transform_3(%arg0: i32, %arg1: i32) -> (i32, i32) {
    %c0_i32 = arith.constant 0 : i32
    %c0_i32_0 = arith.constant 0 : i32
    return %arg0, %c0_i32 : i32, i32
  }
}

</mosaic_0001>

<llo_original>
// kernel: tpu_custom_call.1
$region0: #{tpu_custom_call.1}
  #allocation0 [shape = 'u32[]', space=smem, size = 0x4, offset = 0x4, fixed_abs, tag = 'smem constant byte address 0x4 - core index']
  #allocation1 [shape = 'u32[144,128]{1,0:T(1,128)}', space=vmem, size = 0x12000, scoped, tag = 'internal scratch']
  #allocation2 [shape = 'f32[16,32]{1,0:T(8,128)}', space=vmem, size = 0x2000, scoped, tag = 'scratch operand']
  %s0 = inlined_call_operand.vmem [shape: f32[16,32], index: 0, kind: input, shape index: {}]
  %s1 = inlined_call_operand.vmem [shape: f32[32,192], index: 1, kind: input, shape index: {}]
  %s2 = inlined_call_operand.vmem [shape: f32[96,32], index: 2, kind: input, shape index: {}]
  %s3 = inlined_call_operand.hbm [shape: f32[16,32], index: 3, kind: output, shape index: {}]
  %s4 = sld [smem:[#allocation0]]
  $region30: #{tpu_custom_call.1} parent=0
    _
  %s6 = ssub.s32 1, %s4
  %s7 = scalar_select 0, %s6, %s4
  $region1: #{tpu_custom_call.1} parent=0
    #allocation3 [shape = 'u8[8192]{0}', space=vmem, size = 0x2000, scoped, tag = 'output window, operand 0, single buffered']
    #allocation4 [shape = 's32[1]{0}', space=sflag, size = 0x4, scoped, tag = 'scoped memory for tpu_custom_call.1']
    %8 = vsyncpa [#allocation4], 0
    // Predicated region
    $region2: #{tpu_custom_call.1} parent=1 // pred_check
      _
    $region3: #{tpu_custom_call.1} parent=1 // pred_check_branch
      %10 = sbr.rel (0) target = $region5
    $region4: #{tpu_custom_call.1} parent=1 // pred_region
      _
    $region5: #{tpu_custom_call.1} parent=1 // pred_fallthru
      _
    // Predicated region
    $region6: #{tpu_custom_call.1} parent=1 // pred_check
      _
    $region7: #{tpu_custom_call.1} parent=1 // pred_check_branch
      %12 = sbr.rel (0) target = $region9
    $region8: #{tpu_custom_call.1} parent=1 // pred_region
      _
    $region9: #{tpu_custom_call.1} parent=1 // pred_fallthru
      _
    // Predicated region
    $region10: #{tpu_custom_call.1} parent=1 // pred_check
      _
    $region11: #{tpu_custom_call.1} parent=1 // pred_check_branch
      %14 = sbr.rel (0) target = $region13
    $region12: #{tpu_custom_call.1} parent=1 // pred_region
      _
    $region13: #{tpu_custom_call.1} parent=1 // pred_fallthru
      _
    %p15 = scmp.eq.s32.totalorder 0, 0
    // Predicated region
    $region14: #{tpu_custom_call.1} parent=1 // pred_check
      %p16 = pneg %p15
    $region15: #{tpu_custom_call.1} parent=1 // pred_check_branch
      %18 = sbr.rel (%p16) target = $region17
    $region16: #{tpu_custom_call.1} parent=1 // pred_region
      %vm19 = vcmask 261120
      %20 = vst.msk [vmem:[#allocation2] sm:$0xff] %vm19, 0.0
      %21 = vst.msk [vmem:[#allocation2 + $0x8] sm:$0xff] %vm19, 0.0
    $region17: #{tpu_custom_call.1} parent=1 // pred_fallthru
      _
    %v22 = vld [vmem:[%s0] sm:$0xff]
    %v23 = vld [vmem:[%s0 + $0x8] sm:$0xff]
    %v24 = vld [vmem:[%s1] sm:$0xff]
    %v25 = vld [vmem:[%s1 + $0x8] sm:$0xff]
    %v26 = vld [vmem:[%s1 + $0x10] sm:$0xff]
    %v27 = vld [vmem:[%s1 + $0x18] sm:$0xff]
    %v28 = vld [vmem:[%s1 + $0x20] sm:$0xff]
    %v29 = vld [vmem:[%s1 + $0x28] sm:$0xff]
    %v30 = vld [vmem:[%s1 + $0x30] sm:$0xff]
    %v31 = vld [vmem:[%s1 + $0x38] sm:$0xff]
    %vm32 = vcmask 261120
    %v34 = vsel %vm32, %v22, 0
    %v37 = vsel %vm32, %v23, 0
    %39 = vmatprep.subr.mxu0 %v25
    %40 = vmatpush1.msra.mxu0 %v24
    %41 = vmatprep.subr.mxu0 %v27
    %42 = vmatpush1.msra.mxu0 %v26
    %43 = vmatprep.subr.mxu0 %v29
    %44 = vmatpush1.msra.mxu0 %v28
    %45 = vmatprep.subr.mxu0 %v31
    %46 = vmatpush1.msra.mxu0 %v30
    %47 = vmatprep.subr.mxu0 0.0
    %48 = vmatpush1.msra.mxu0 0.0
    %49 = vmatprep.subr.mxu0 0.0
    %50 = vmatpush1.msra.mxu0 0.0
    %51 = vmatprep.subr.mxu0 0.0
    %52 = vmatpush1.msra.mxu0 0.0
    %53 = vmatprep.subr.mxu0 0.0
    %54 = vmatpush1.msra.mxu0 0.0
    %55 = vmatprep.subr.mxu0 0.0
    %56 = vmatpush1.msra.mxu0 0.0
    %57 = vmatprep.subr.mxu0 0.0
    %58 = vmatpush1.msra.mxu0 0.0
    %59 = vmatprep.subr.mxu0 0.0
    %60 = vmatpush1.msra.mxu0 0.0
    %61 = vmatprep.subr.mxu0 0.0
    %62 = vmatpush1.msra.mxu0 0.0
    %63 = vmatprep.subr.mxu0 0.0
    %64 = vmatpush1.msra.mxu0 0.0
    %65 = vmatprep.subr.mxu0 0.0
    %66 = vmatpush1.msra.mxu0 0.0
    %67 = vmatprep.subr.mxu0 0.0
    %68 = vmatpush1.msra.mxu0 0.0
    %69 = vmatprep.subr.mxu0 0.0
    %70 = vmatpush1.msra.mxu0 0.0
    %71 = vmatprep.subr.mxu0 0.0
    %72 = vmatpush1.msra.mxu0 0.0
    %73 = vmatprep.subr.mxu0 0.0
    %74 = vmatpush1.msra.mxu0 0.0
    %75 = vmatprep.subr.mxu0 0.0
    %76 = vmatpush1.msra.mxu0 0.0
    %77 = vmatprep.subr.mxu0 0.0
    %78 = vmatpush1.msra.mxu0 0.0
    %79 = vmatprep.subr.mxu0 0.0
    %80 = vmatpush1.msra.mxu0 0.0
    %81 = vmatprep.subr.mxu0 0.0
    %82 = vmatpush1.msra.mxu0 0.0
    %83 = vmatprep.subr.mxu0 0.0
    %84 = vmatpush1.msra.mxu0 0.0
    %85 = vmatprep.subr.mxu0 0.0
    %86 = vmatpush1.msra.mxu0 0.0
    %87 = vmatprep.subr.mxu0 0.0
    %88 = vmatpush1.msra.mxu0 0.0
    %89 = vmatprep.subr.mxu0 0.0
    %90 = vmatpush1.msra.mxu0 0.0
    %91 = vmatprep.subr.mxu0 0.0
    %92 = vmatpush1.msra.mxu0 0.0
    %93 = vmatprep.subr.mxu0 0.0
    %94 = vmatpush1.msra.mxu0 0.0
    %95 = vmatprep.subr.mxu0 0.0
    %96 = vmatpush1.msra.mxu0 0.0
    %97 = vmatprep.subr.mxu0 0.0
    %98 = vmatpush1.msra.mxu0 0.0
    %99 = vmatprep.subr.mxu0 0.0
    %100 = vmatpush1.msra.mxu0 0.0
    %101 = vmatprep.subr.mxu0 0.0
    %102 = vmatpush1.msra.mxu0 0.0
    %103 = vmatprep.mubr.f32.mxu0 0.0
    %104 = vmatmul.mubr.f32.gmra.mrb[0].mxu0 %v34
    %v105 = vpop.f32.mrb[0].mxu0
    %v106 = vadd.f32 0.0, %v105
    %v107 = vpop.f32.mrb[0].mxu0
    %v108 = vadd.f32 0.0, %v107
    %109 = vmatprep.mubr.f32.mxu0 0.0
    %110 = vmatmul.mubr.f32.gmra.mrb[0].mxu0 %v37
    %v111 = vpop.f32.mrb[0].mxu0
    %v112 = vadd.f32 0.0, %v111
    %v113 = vpop.f32.mrb[0].mxu0
    %v114 = vadd.f32 0.0, %v113
    %115 = vdwg.mxu0
    %v116 = vxor.u32 %v106, 2147483648
    %v117 = vxor.u32 %v112, 2147483648
    %v118 = vmul.f32 %v116, 1.442695
    %v119 = vpow.pop %v118
    %v120 = vmul.f32 %v117, 1.442695
    %v121 = vpow.pop %v120
    %v122 = vadd.f32 %v119, 1.0
    %v123 = vadd.f32 %v121, 1.0
    %v124 = vrcp.pop %v122
    %v125 = vmul.f32 1.0, %v124
    %v126 = vrcp.pop %v123
    %v127 = vmul.f32 1.0, %v126
    %v128 = vmul.f32 %v106, %v125
    %v129 = vmul.f32 %v112, %v127
    %134 = vrot.lane.b32.xlu0 %v106, 32
    %v135 = vpop.permute.xlu0 %134
    %136 = vrot.lane.b32.xlu0 %v108, 32
    %v137 = vpop.permute.xlu0 %136
    %138 = vrot.lane.b32.xlu0 %v112, 32
    %v139 = vpop.permute.xlu0 %138
    %140 = vrot.lane.b32.xlu0 %v114, 32
    %v141 = vpop.permute.xlu0 %140
    %v142 = vsel %vm32, %v135, %v137
    %v143 = vsel %vm32, %v139, %v141
    %v146 = vmul.f32 %v128, %v142
    %v147 = vmul.f32 %v129, %v143
    %v148 = vld [vmem:[#allocation2] sm:$0xff]
    %v149 = vld [vmem:[#allocation2 + $0x8] sm:$0xff]
    %v150 = vld [vmem:[%s2] sm:$0xff]
    %v151 = vld [vmem:[%s2 + $0x8] sm:$0xff]
    %v152 = vld [vmem:[%s2 + $0x10] sm:$0xff]
    %v153 = vld [vmem:[%s2 + $0x18] sm:$0xff]
    %v154 = vld [vmem:[%s2 + $0x20] sm:$0xff]
    %v155 = vld [vmem:[%s2 + $0x28] sm:$0xff]
    %v156 = vld [vmem:[%s2 + $0x30] sm:$0xff]
    %v157 = vld [vmem:[%s2 + $0x38] sm:$0xff]
    %v158 = vld [vmem:[%s2 + $0x40] sm:$0xff]
    %v159 = vld [vmem:[%s2 + $0x48] sm:$0xff]
    %v160 = vld [vmem:[%s2 + $0x50] sm:$0xff]
    %v161 = vld [vmem:[%s2 + $0x58] sm:$0xff]
    %vm162 = vcmask 785408
    %v164 = vsel %vm162, %v146, 0
    %v167 = vsel %vm162, %v147, 0
    %169 = vmatprep.subr.mxu0 0.0
    %170 = vmatpush1.msra.mxu0 %v150
    %171 = vmatprep.subr.mxu0 0.0
    %172 = vmatpush1.msra.mxu0 %v151
    %173 = vmatprep.subr.mxu0 0.0
    %174 = vmatpush1.msra.mxu0 %v152
    %175 = vmatprep.subr.mxu0 0.0
    %176 = vmatpush1.msra.mxu0 %v153
    %177 = vmatprep.subr.mxu0 0.0
    %178 = vmatpush1.msra.mxu0 %v154
    %179 = vmatprep.subr.mxu0 0.0
    %180 = vmatpush1.msra.mxu0 %v155
    %181 = vmatprep.subr.mxu0 0.0
    %182 = vmatpush1.msra.mxu0 %v156
    %183 = vmatprep.subr.mxu0 0.0
    %184 = vmatpush1.msra.mxu0 %v157
    %185 = vmatprep.subr.mxu0 0.0
    %186 = vmatpush1.msra.mxu0 %v158
    %187 = vmatprep.subr.mxu0 0.0
    %188 = vmatpush1.msra.mxu0 %v159
    %189 = vmatprep.subr.mxu0 0.0
    %190 = vmatpush1.msra.mxu0 %v160
    %191 = vmatprep.subr.mxu0 0.0
    %192 = vmatpush1.msra.mxu0 %v161
    %193 = vmatprep.subr.mxu0 0.0
    %194 = vmatpush1.msra.mxu0 0.0
    %195 = vmatprep.subr.mxu0 0.0
    %196 = vmatpush1.msra.mxu0 0.0
    %197 = vmatprep.subr.mxu0 0.0
    %198 = vmatpush1.msra.mxu0 0.0
    %199 = vmatprep.subr.mxu0 0.0
    %200 = vmatpush1.msra.mxu0 0.0
    %201 = vmatprep.subr.mxu0 0.0
    %202 = vmatpush1.msra.mxu0 0.0
    %203 = vmatprep.subr.mxu0 0.0
    %204 = vmatpush1.msra.mxu0 0.0
    %205 = vmatprep.subr.mxu0 0.0
    %206 = vmatpush1.msra.mxu0 0.0
    %207 = vmatprep.subr.mxu0 0.0
    %208 = vmatpush1.msra.mxu0 0.0
    %209 = vmatprep.subr.mxu0 0.0
    %210 = vmatpush1.msra.mxu0 0.0
    %211 = vmatprep.subr.mxu0 0.0
    %212 = vmatpush1.msra.mxu0 0.0
    %213 = vmatprep.subr.mxu0 0.0
    %214 = vmatpush1.msra.mxu0 0.0
    %215 = vmatprep.subr.mxu0 0.0
    %216 = vmatpush1.msra.mxu0 0.0
    %217 = vmatprep.subr.mxu0 0.0
    %218 = vmatpush1.msra.mxu0 0.0
    %219 = vmatprep.subr.mxu0 0.0
    %220 = vmatpush1.msra.mxu0 0.0
    %221 = vmatprep.subr.mxu0 0.0
    %222 = vmatpush1.msra.mxu0 0.0
    %223 = vmatprep.subr.mxu0 0.0
    %224 = vmatpush1.msra.mxu0 0.0
    %225 = vmatprep.subr.mxu0 0.0
    %226 = vmatpush1.msra.mxu0 0.0
    %227 = vmatprep.subr.mxu0 0.0
    %228 = vmatpush1.msra.mxu0 0.0
    %229 = vmatprep.subr.mxu0 0.0
    %230 = vmatpush1.msra.mxu0 0.0
    %231 = vmatprep.subr.mxu0 0.0
    %232 = vmatpush1.msra.mxu0 0.0
    %233 = vmatprep.mubr.f32.mxu0 0.0
    %234 = vmatmul.mubr.f32.gmra.mrb[0].mxu0 %v164
    %v235 = vpop.f32.mrb[0].mxu0
    %v236 = vadd.f32 0.0, %v235
    %v237 = vpop.f32.mrb[0].mxu0
    %238 = vmatprep.mubr.f32.mxu0 0.0
    %239 = vmatmul.mubr.f32.gmra.mrb[0].mxu0 %v167
    %v240 = vpop.f32.mrb[0].mxu0
    %v241 = vadd.f32 0.0, %v240
    %v242 = vpop.f32.mrb[0].mxu0
    %243 = vdwg.mxu0
    %v244 = vadd.f32 %v148, %v236
    %v245 = vadd.f32 %v149, %v241
    %246 = vst.msk [vmem:[#allocation2] sm:$0xff] %vm32, %v244
    %247 = vst.msk [vmem:[#allocation2 + $0x8] sm:$0xff] %vm32, %v245
    // Predicated region
    $region18: #{tpu_custom_call.1} parent=1 // pred_check
      %p248 = pneg %p15
    $region19: #{tpu_custom_call.1} parent=1 // pred_check_branch
      %250 = sbr.rel (%p248) target = $region21
    $region20: #{tpu_custom_call.1} parent=1 // pred_region
      %v251 = vld [vmem:[#allocation2] sm:$0xff]
      %v252 = vld [vmem:[#allocation2 + $0x8] sm:$0xff]
      %253 = vst.msk [vmem:[#allocation3] sm:$0xff] %vm32, %v251
      %254 = vst.msk [vmem:[#allocation3 + $0x8] sm:$0xff] %vm32, %v252
    $region21: #{tpu_custom_call.1} parent=1 // pred_fallthru
      _
    // Predicated region
    $region22: #{tpu_custom_call.1} parent=1 // pred_check
      _
    $region23: #{tpu_custom_call.1} parent=1 // pred_check_branch
      %256 = sbr.rel (0) target = $region25
    $region24: #{tpu_custom_call.1} parent=1 // pred_region
      %s258 = ssub.s32 256, 256
      %259 = vsyncadd [#allocation4], %s258
      %s260 = sshll.u32 [#allocation3], 4
      %s261 = int_to_ptr.vmem [resolvable:$true] %s260
      %266 = dma.vmem_to_hbm [thread:$0]  %s261, 256, %s3, [#allocation4], 128, 128, 8
    $region25: #{tpu_custom_call.1} parent=1 // pred_fallthru
      _
    // Predicated region
    $region26: #{tpu_custom_call.1} parent=1 // pred_check
      _
    $region27: #{tpu_custom_call.1} parent=1 // pred_check_branch
      %268 = sbr.rel (0) target = $region29
    $region28: #{tpu_custom_call.1} parent=1 // pred_region
      %269 = dma.done [#allocation4], 256
    $region29: #{tpu_custom_call.1} parent=1 // pred_fallthru
      _
    %270 = vsyncpa [#allocation4], 1

</llo_original>
